<compile_context>
chip_gen: v7x
topology: tpu7x:2x2x1
jax: 0.10.0
libtpu: 0.0.40
codegen_flags: <defaults>
</compile_context>

<pallas_src>
import jax
import jax.numpy as jnp
from jax.experimental import pallas as pl
from jax.experimental.pallas import tpu as pltpu


def _round_up(n, m):
    return (n + m - 1) // m * m


def mlp_kernel(x_ref, w1_ref, b1_ref, w2_ref, b2_ref, o_ref):
    # x_ref : (Fp, TB) bf16  -- input tile, batch on the lane axis
    # w1_ref: (Hp, Fp) bf16  -- layer1 weight (PyTorch (out, in) layout), resident
    # b1_ref: (Hp, 1)  f32   -- layer1 bias column, resident
    # w2_ref: (Hp, 1)  f32   -- layer2 weight column, resident (padded rows are 0)
    # b2_ref: (1, 1)   f32   -- layer2 bias scalar, in SMEM
    # o_ref : (1, TB)  f32   -- lane-dense output row
    h = jnp.dot(w1_ref[...], x_ref[...],
                preferred_element_type=jnp.float32)          # MXU, (Hp, TB) f32
    h = jnp.maximum(h + b1_ref[...], 0.0)                    # VPU bias + ReLU
    # layer2 has output width 1: use VPU multiply + cross-sublane reduce
    # instead of a 1-lane-wide MXU matmul.
    y = jnp.sum(h * w2_ref[...], axis=0, keepdims=True)      # (1, TB)
    o_ref[...] = jnp.maximum(y + b2_ref[0, 0], 0.0).astype(o_ref.dtype)


def mlp_classifier(x, w1, b1, w2, b2, *, block_b=512):
    """Fused MLP forward.

    Args (native PyTorch nn.Linear layouts):
      x : (B, F) float32
      w1: (H, F)  layer1.weight      b1: (H,)  layer1.bias
      w2: (1, H)  layer2.weight      b2: (1,)  layer2.bias
    Returns: (B,) float32  (matches torch `x.squeeze()` for B > 1)
    """
    B, F = x.shape
    H = w1.shape[0]

    Fp = _round_up(F, 128)                       # pad contraction dim to full lanes
    Hp = _round_up(H, 128)                       # pad hidden dim to full lanes
    tb = min(block_b, _round_up(B, 128))         # batch tile (>=128 lanes)
    Bp = _round_up(B, tb)
    n_tiles = Bp // tb

    # Batch on the lane axis: one transpose pass in the wrapper buys lane-dense
    # matmul output and lane-dense (1, TB) stores in the kernel.
    x_t = jnp.zeros((Fp, Bp), jnp.bfloat16).at[:F, :B].set(x.T.astype(jnp.bfloat16))
    # Zero-padded params: padded w1 cols / b1 rows give h == 0 there, and padded
    # w2 rows are 0, so the padding contributes exactly nothing to layer2.
    w1_p = jnp.zeros((Hp, Fp), jnp.bfloat16).at[:H, :F].set(w1.astype(jnp.bfloat16))
    b1_p = jnp.zeros((Hp, 1), jnp.float32).at[:H, 0].set(b1.astype(jnp.float32))
    w2_p = jnp.zeros((Hp, 1), jnp.float32).at[:H, 0].set(
        w2.reshape(H).astype(jnp.float32))
    b2_s = b2.reshape(1, 1).astype(jnp.float32)

    out = pl.pallas_call(
        mlp_kernel,
        out_shape=jax.ShapeDtypeStruct((1, Bp), jnp.float32),
        grid_spec=pltpu.PrefetchScalarGridSpec(
            num_scalar_prefetch=0,
            grid=(n_tiles,),
            in_specs=[
                pl.BlockSpec((Fp, tb), lambda i: (0, i)),            # x tile (pipelined)
                pl.BlockSpec((Hp, Fp), lambda i: (0, 0)),            # w1 resident
                pl.BlockSpec((Hp, 1), lambda i: (0, 0)),             # b1 resident
                pl.BlockSpec((Hp, 1), lambda i: (0, 0)),             # w2 resident
                pl.BlockSpec(memory_space=pltpu.MemorySpace.SMEM),   # b2 scalar
            ],
            out_specs=pl.BlockSpec((1, tb), lambda i: (0, i)),
        ),
        compiler_params=pltpu.CompilerParams(
            # Independent batch tiles: shard across TensorCores on v7x, harmless
            # on v5e/v6e.
            dimension_semantics=("parallel",),
        ),
    )(x_t, w1_p, b1_p, w2_p, b2_s)

    # Drop batch padding; result is (B,) like torch's .squeeze() on (B, 1).
    return out[0, :B]


if __name__ == "__main__":
    # Small shapes consistent with the module: batch=8, input_feature=32, hidden=32
    B, F, H = 8, 32, 32
    key = jax.random.PRNGKey(0)
    kx, k1, k2, k3, k4 = jax.random.split(key, 5)

    x = jax.random.normal(kx, (B, F), dtype=jnp.float32)
    # Parameters in native PyTorch nn.Linear layouts.
    w1 = jax.random.normal(k1, (H, F), dtype=jnp.float32) * 0.1
    b1 = jax.random.normal(k2, (H,), dtype=jnp.float32) * 0.1
    w2 = jax.random.normal(k3, (1, H), dtype=jnp.float32) * 0.1
    b2 = jax.random.normal(k4, (1,), dtype=jnp.float32) * 0.1

    out = jax.block_until_ready(mlp_classifier(x, w1, b1, w2, b2))

    # Plain-JAX f32 reference (same math as the PyTorch forward).
    ref = jnp.maximum(x @ w1.T + b1, 0.0)
    ref = jnp.maximum(ref @ w2.T + b2, 0.0)[:, 0]

    assert out.shape == (B,), out.shape
    # Layer1 runs in bf16 on the MXU (f32 accumulate), so allow bf16-level tolerance.
    assert jnp.allclose(out, ref, atol=2e-2, rtol=2e-2), float(jnp.max(jnp.abs(out - ref)))

    print("KERNEL_OK")
</pallas_src>

<mosaic_0001>
module attributes {stable_mosaic.version = 11 : i64} {
  func.func @mlp_kernel(%arg0: i32, %arg1: memref<128x128xbf16, #tpu.memory_space<vmem>>, %arg2: memref<128x128xbf16, #tpu.memory_space<vmem>>, %arg3: memref<128x1xf32, #tpu.memory_space<vmem>>, %arg4: memref<128x1xf32, #tpu.memory_space<vmem>>, %arg5: memref<1x1xf32, #tpu.memory_space<smem>>, %arg6: memref<1x128xf32, #tpu.memory_space<vmem>>) attributes {dimension_semantics = [#tpu.dimension_semantics<parallel>], iteration_bounds = array<i64: 1>, scalar_prefetch = 0 : i64, scratch_operands = 0 : i64, tpu.core_type = #tpu.core_type<tc>, window_params = [{transform_indices = @transform_0, window_bounds = array<i64: 128, 128>}, {pipeline_mode = #tpu.pipeline_mode<synchronous>, transform_indices = @transform_1, window_bounds = array<i64: 128, 128>}, {pipeline_mode = #tpu.pipeline_mode<synchronous>, transform_indices = @transform_2, window_bounds = array<i64: 128, 1>}, {pipeline_mode = #tpu.pipeline_mode<synchronous>, transform_indices = @transform_3, window_bounds = array<i64: 128, 1>}, {transform_indices = @transform_4, window_bounds = array<i64: 1, 1>}, {transform_indices = @transform_5, window_bounds = array<i64: 1, 128>}]} {
    %c0 = arith.constant 0 : index
    %c0_0 = arith.constant 0 : index
    %0 = vector.load %arg2[%c0, %c0_0] : memref<128x128xbf16, #tpu.memory_space<vmem>>, vector<128x128xbf16>
    %c0_1 = arith.constant 0 : index
    %c0_2 = arith.constant 0 : index
    %1 = vector.load %arg1[%c0_1, %c0_2] : memref<128x128xbf16, #tpu.memory_space<vmem>>, vector<128x128xbf16>
    %cst = arith.constant dense<0.000000e+00> : vector<128x128xf32>
    %2 = tpu.matmul %0, %1, %cst {dimension_numbers = #tpu.dot_dimension_numbers<[1], [0], [0], [1], [0, 0, 1, 1], [], []>} : vector<128x128xbf16>, vector<128x128xbf16>, vector<128x128xf32> -> vector<128x128xf32>
    %c0_3 = arith.constant 0 : index
    %c0_4 = arith.constant 0 : index
    %3 = vector.load %arg3[%c0_3, %c0_4] : memref<128x1xf32, #tpu.memory_space<vmem>>, vector<128x1xf32>
    %4 = vector.broadcast %3 : vector<128x1xf32> to vector<128x128xf32>
    %5 = arith.addf %2, %4 : vector<128x128xf32>
    %cst_5 = arith.constant 0.000000e+00 : f32
    %6 = vector.broadcast %cst_5 : f32 to vector<128x128xf32>
    %7 = arith.maximumf %5, %6 : vector<128x128xf32>
    %c0_6 = arith.constant 0 : index
    %c0_7 = arith.constant 0 : index
    %8 = vector.load %arg4[%c0_6, %c0_7] : memref<128x1xf32, #tpu.memory_space<vmem>>, vector<128x1xf32>
    %9 = vector.broadcast %8 : vector<128x1xf32> to vector<128x128xf32>
    %10 = arith.mulf %7, %9 : vector<128x128xf32>
    %cst_8 = arith.constant dense<0.000000e+00> : vector<128xf32>
    %11 = vector.multi_reduction <add>, %10, %cst_8 [0] : vector<128x128xf32> to vector<128xf32>
    %12 = vector.shape_cast %11 : vector<128xf32> to vector<1x128xf32>
    %c0_9 = arith.constant 0 : index
    %c0_10 = arith.constant 0 : index
    %13 = memref.load %arg5[%c0_9, %c0_10] : memref<1x1xf32, #tpu.memory_space<smem>>
    %14 = vector.broadcast %13 : f32 to vector<1x128xf32>
    %15 = arith.addf %12, %14 : vector<1x128xf32>
    %cst_11 = arith.constant 0.000000e+00 : f32
    %16 = vector.broadcast %cst_11 : f32 to vector<1x128xf32>
    %17 = arith.maximumf %15, %16 : vector<1x128xf32>
    %c0_12 = arith.constant 0 : index
    %c0_13 = arith.constant 0 : index
    %18 = vector.load %arg6[%c0_12, %c0_13] : memref<1x128xf32, #tpu.memory_space<vmem>>, vector<1x128xf32>
    tpu.vector_store %arg6[%c0_12, %c0_13], %17 {strides = array<i32>} : memref<1x128xf32, #tpu.memory_space<vmem>>, vector<1x128xf32>,
    return
  }
  func.func @transform_0(%arg0: i32) -> (i32, i32) {
    %c0_i32 = arith.constant 0 : i32
    %c0_i32_0 = arith.constant 0 : i32
    return %c0_i32, %arg0 : i32, i32
  }
  func.func @transform_1(%arg0: i32) -> (i32, i32) {
    %c0_i32 = arith.constant 0 : i32
    %c0_i32_0 = arith.constant 0 : i32
    %c0_i32_1 = arith.constant 0 : i32
    return %c0_i32, %c0_i32_0 : i32, i32
  }
  func.func @transform_2(%arg0: i32) -> (i32, i32) {
    %c0_i32 = arith.constant 0 : i32
    %c0_i32_0 = arith.constant 0 : i32
    %c0_i32_1 = arith.constant 0 : i32
    return %c0_i32, %c0_i32_0 : i32, i32
  }
  func.func @transform_3(%arg0: i32) -> (i32, i32) {
    %c0_i32 = arith.constant 0 : i32
    %c0_i32_0 = arith.constant 0 : i32
    %c0_i32_1 = arith.constant 0 : i32
    return %c0_i32, %c0_i32_0 : i32, i32
  }
  func.func @transform_4(%arg0: i32) -> (i32, i32) {
    %c0_i32 = arith.constant 0 : i32
    %c0_i32_0 = arith.constant 0 : i32
    %c0_i32_1 = arith.constant 0 : i32
    return %c0_i32, %c0_i32_0 : i32, i32
  }
  func.func @transform_5(%arg0: i32) -> (i32, i32) {
    %c0_i32 = arith.constant 0 : i32
    %c0_i32_0 = arith.constant 0 : i32
    return %c0_i32, %arg0 : i32, i32
  }
}

</mosaic_0001>

<llo_original>
// kernel: tpu_custom_call.1
$region0: #{tpu_custom_call.1}
  #allocation0 [shape = 'u32[]', space=smem, size = 0x4, offset = 0x4, fixed_abs, tag = 'smem constant byte address 0x4 - core index']
  #allocation1 [shape = 'u32[144,128]{1,0:T(1,128)}', space=vmem, size = 0x12000, scoped, tag = 'internal scratch']
  #allocation2 [shape = 'f32[1,1]{1,0:T(1,128)S(6)}', space=smem, size = 0x200, scoped, tag = 'scoped memory for tpu_custom_call.1']
  %s0 = inlined_call_operand.vmem [shape: bf16[128,128], index: 0, kind: input, shape index: {}]
  %s1 = inlined_call_operand.vmem [shape: bf16[128,128], index: 1, kind: input, shape index: {}]
  %s2 = inlined_call_operand.vmem [shape: f32[128,1], index: 2, kind: input, shape index: {}]
  %s3 = inlined_call_operand.vmem [shape: f32[128,1], index: 3, kind: input, shape index: {}]
  %s4 = inlined_call_operand.<no memory space> [shape: f32[1,1], index: 4, kind: input, shape index: {}]
  %s5 = inlined_call_operand.hbm [shape: f32[1,128], index: 5, kind: output, shape index: {}]
  %s6 = sld [smem:[#allocation0]]
  $region30: #{tpu_custom_call.1} parent=0
    _
  %s8 = ssub.s32 1, %s6
  %s9 = scalar_select 0, %s8, %s6
  %10 = sst [smem:[#allocation2]] %s4
  $region1: #{tpu_custom_call.1} parent=0
    #allocation3 [shape = 'u8[512]{0}', space=vmem, size = 0x400, scoped, tag = 'output window, operand 0, single buffered']
    #allocation4 [shape = 's32[1]{0}', space=sflag, size = 0x4, scoped, tag = 'scoped memory for tpu_custom_call.1']
    %11 = vsyncpa [#allocation4], 0
    // Predicated region
    $region2: #{tpu_custom_call.1} parent=1 // pred_check
      _
    $region3: #{tpu_custom_call.1} parent=1 // pred_check_branch
      %13 = sbr.rel (0) target = $region5
    $region4: #{tpu_custom_call.1} parent=1 // pred_region
      _
    $region5: #{tpu_custom_call.1} parent=1 // pred_fallthru
      _
    // Predicated region
    $region6: #{tpu_custom_call.1} parent=1 // pred_check
      _
    $region7: #{tpu_custom_call.1} parent=1 // pred_check_branch
      %15 = sbr.rel (0) target = $region9
    $region8: #{tpu_custom_call.1} parent=1 // pred_region
      _
    $region9: #{tpu_custom_call.1} parent=1 // pred_fallthru
      _
    // Predicated region
    $region10: #{tpu_custom_call.1} parent=1 // pred_check
      _
    $region11: #{tpu_custom_call.1} parent=1 // pred_check_branch
      %17 = sbr.rel (0) target = $region13
    $region12: #{tpu_custom_call.1} parent=1 // pred_region
      _
    $region13: #{tpu_custom_call.1} parent=1 // pred_fallthru
      _
    // Predicated region
    $region14: #{tpu_custom_call.1} parent=1 // pred_check
      _
    $region15: #{tpu_custom_call.1} parent=1 // pred_check_branch
      %19 = sbr.rel (0) target = $region17
    $region16: #{tpu_custom_call.1} parent=1 // pred_region
      _
    $region17: #{tpu_custom_call.1} parent=1 // pred_fallthru
      _
    // Predicated region
    $region18: #{tpu_custom_call.1} parent=1 // pred_check
      _
    $region19: #{tpu_custom_call.1} parent=1 // pred_check_branch
      %21 = sbr.rel (0) target = $region21
    $region20: #{tpu_custom_call.1} parent=1 // pred_region
      _
    $region21: #{tpu_custom_call.1} parent=1 // pred_fallthru
      _
    %v23 = vld [vmem:[%s1] sm:$0xf]
    %v24 = vld [vmem:[%s1 + $0x4] sm:$0xf]
    %v25 = vld [vmem:[%s1 + $0x8] sm:$0xf]
    %v26 = vld [vmem:[%s1 + $0xc] sm:$0xf]
    %v27 = vld [vmem:[%s1 + $0x10] sm:$0xf]
    %v28 = vld [vmem:[%s1 + $0x14] sm:$0xf]
    %v29 = vld [vmem:[%s1 + $0x18] sm:$0xf]
    %v30 = vld [vmem:[%s1 + $0x1c] sm:$0xf]
    %v31 = vld [vmem:[%s1 + $0x20] sm:$0xf]
    %v32 = vld [vmem:[%s1 + $0x24] sm:$0xf]
    %v33 = vld [vmem:[%s1 + $0x28] sm:$0xf]
    %v34 = vld [vmem:[%s1 + $0x2c] sm:$0xf]
    %v35 = vld [vmem:[%s1 + $0x30] sm:$0xf]
    %v36 = vld [vmem:[%s1 + $0x34] sm:$0xf]
    %v37 = vld [vmem:[%s1 + $0x38] sm:$0xf]
    %v38 = vld [vmem:[%s1 + $0x3c] sm:$0xf]
    %v39 = vld [vmem:[%s0] sm:$0xf]
    %v40 = vld [vmem:[%s0 + $0x4] sm:$0xf]
    %v41 = vld [vmem:[%s0 + $0x8] sm:$0xf]
    %v42 = vld [vmem:[%s0 + $0xc] sm:$0xf]
    %v43 = vld [vmem:[%s0 + $0x10] sm:$0xf]
    %v44 = vld [vmem:[%s0 + $0x14] sm:$0xf]
    %v45 = vld [vmem:[%s0 + $0x18] sm:$0xf]
    %v46 = vld [vmem:[%s0 + $0x1c] sm:$0xf]
    %v47 = vld [vmem:[%s0 + $0x20] sm:$0xf]
    %v48 = vld [vmem:[%s0 + $0x24] sm:$0xf]
    %v49 = vld [vmem:[%s0 + $0x28] sm:$0xf]
    %v50 = vld [vmem:[%s0 + $0x2c] sm:$0xf]
    %v51 = vld [vmem:[%s0 + $0x30] sm:$0xf]
    %v52 = vld [vmem:[%s0 + $0x34] sm:$0xf]
    %v53 = vld [vmem:[%s0 + $0x38] sm:$0xf]
    %v54 = vld [vmem:[%s0 + $0x3c] sm:$0xf]
    %v55 = vld [vmem:[%s2] sm:$0xff]
    %v56 = vld [vmem:[%s2 + $0x8] sm:$0xff]
    %v57 = vld [vmem:[%s2 + $0x10] sm:$0xff]
    %v58 = vld [vmem:[%s2 + $0x18] sm:$0xff]
    %v59 = vld [vmem:[%s2 + $0x20] sm:$0xff]
    %v60 = vld [vmem:[%s2 + $0x28] sm:$0xff]
    %v61 = vld [vmem:[%s2 + $0x30] sm:$0xff]
    %v62 = vld [vmem:[%s2 + $0x38] sm:$0xff]
    %v63 = vld [vmem:[%s2 + $0x40] sm:$0xff]
    %v64 = vld [vmem:[%s2 + $0x48] sm:$0xff]
    %v65 = vld [vmem:[%s2 + $0x50] sm:$0xff]
    %v66 = vld [vmem:[%s2 + $0x58] sm:$0xff]
    %v67 = vld [vmem:[%s2 + $0x60] sm:$0xff]
    %v68 = vld [vmem:[%s2 + $0x68] sm:$0xff]
    %v69 = vld [vmem:[%s2 + $0x70] sm:$0xff]
    %v70 = vld [vmem:[%s2 + $0x78] sm:$0xff]
    %72 = vset.pattern.permute.xlu0 0
    %73 = vperm.xlu0 %72, %v55
    %v74 = vpop.permute.xlu0 %73
    %77 = vset.pattern.permute.xlu0 0
    %78 = vperm.xlu0 %77, %v56
    %v79 = vpop.permute.xlu0 %78
    %82 = vset.pattern.permute.xlu0 0
    %83 = vperm.xlu0 %82, %v57
    %v84 = vpop.permute.xlu0 %83
    %87 = vset.pattern.permute.xlu0 0
    %88 = vperm.xlu0 %87, %v58
    %v89 = vpop.permute.xlu0 %88
    %92 = vset.pattern.permute.xlu0 0
    %93 = vperm.xlu0 %92, %v59
    %v94 = vpop.permute.xlu0 %93
    %97 = vset.pattern.permute.xlu0 0
    %98 = vperm.xlu0 %97, %v60
    %v99 = vpop.permute.xlu0 %98
    %102 = vset.pattern.permute.xlu0 0
    %103 = vperm.xlu0 %102, %v61
    %v104 = vpop.permute.xlu0 %103
    %107 = vset.pattern.permute.xlu0 0
    %108 = vperm.xlu0 %107, %v62
    %v109 = vpop.permute.xlu0 %108
    %112 = vset.pattern.permute.xlu0 0
    %113 = vperm.xlu0 %112, %v63
    %v114 = vpop.permute.xlu0 %113
    %117 = vset.pattern.permute.xlu0 0
    %118 = vperm.xlu0 %117, %v64
    %v119 = vpop.permute.xlu0 %118
    %122 = vset.pattern.permute.xlu0 0
    %123 = vperm.xlu0 %122, %v65
    %v124 = vpop.permute.xlu0 %123
    %127 = vset.pattern.permute.xlu0 0
    %128 = vperm.xlu0 %127, %v66
    %v129 = vpop.permute.xlu0 %128
    %132 = vset.pattern.permute.xlu0 0
    %133 = vperm.xlu0 %132, %v67
    %v134 = vpop.permute.xlu0 %133
    %137 = vset.pattern.permute.xlu0 0
    %138 = vperm.xlu0 %137, %v68
    %v139 = vpop.permute.xlu0 %138
    %142 = vset.pattern.permute.xlu0 0
    %143 = vperm.xlu0 %142, %v69
    %v144 = vpop.permute.xlu0 %143
    %147 = vset.pattern.permute.xlu0 0
    %148 = vperm.xlu0 %147, %v70
    %v149 = vpop.permute.xlu0 %148
    %v167 = vunpack.c.l.b16 %v23
    %v168 = vunpack.c.l.b16 %v24
    %v169 = vunpack.c.l.b16 %v25
    %v170 = vunpack.c.l.b16 %v26
    %v171 = vunpack.c.l.b16 %v27
    %v172 = vunpack.c.l.b16 %v28
    %v173 = vunpack.c.l.b16 %v29
    %v174 = vunpack.c.l.b16 %v30
    %v175 = vunpack.c.l.b16 %v31
    %v176 = vunpack.c.l.b16 %v32
    %v177 = vunpack.c.l.b16 %v33
    %v178 = vunpack.c.l.b16 %v34
    %v179 = vunpack.c.l.b16 %v35
    %v180 = vunpack.c.l.b16 %v36
    %v181 = vunpack.c.l.b16 %v37
    %v182 = vunpack.c.l.b16 %v38
    %v183 = vpack.c.b16 %v168, %v167
    %v184 = vpack.c.b16 %v170, %v169
    %v185 = vpack.c.b16 %v172, %v171
    %v186 = vpack.c.b16 %v174, %v173
    %v187 = vpack.c.b16 %v176, %v175
    %v188 = vpack.c.b16 %v178, %v177
    %v189 = vpack.c.b16 %v180, %v179
    %v190 = vpack.c.b16 %v182, %v181
    %v215 = vunpack.c.l.b16 %v39
    %v216 = vunpack.c.l.b16 %v40
    %v217 = vunpack.c.l.b16 %v41
    %v218 = vunpack.c.l.b16 %v42
    %v219 = vunpack.c.l.b16 %v43
    %v220 = vunpack.c.l.b16 %v44
    %v221 = vunpack.c.l.b16 %v45
    %v222 = vunpack.c.l.b16 %v46
    %v223 = vunpack.c.l.b16 %v47
    %v224 = vunpack.c.l.b16 %v48
    %v225 = vunpack.c.l.b16 %v49
    %v226 = vunpack.c.l.b16 %v50
    %v227 = vunpack.c.l.b16 %v51
    %v228 = vunpack.c.l.b16 %v52
    %v229 = vunpack.c.l.b16 %v53
    %v230 = vunpack.c.l.b16 %v54
    %v231 = vpack.c.b16 %v216, %v215
    %v232 = vpack.c.b16 %v218, %v217
    %v233 = vpack.c.b16 %v220, %v219
    %v234 = vpack.c.b16 %v222, %v221
    %v235 = vpack.c.b16 %v224, %v223
    %v236 = vpack.c.b16 %v226, %v225
    %v237 = vpack.c.b16 %v228, %v227
    %v238 = vpack.c.b16 %v230, %v229
    %247 = vmatprep.subr.bf16.mxu0 0
    %248 = vmatpush1.bf16.msra.mxu0 %v231
    %249 = vmatprep.subr.bf16.mxu0 0
    %250 = vmatpush1.bf16.msra.mxu0 %v232
    %251 = vmatprep.subr.bf16.mxu0 0
    %252 = vmatpush1.bf16.msra.mxu0 %v233
    %253 = vmatprep.subr.bf16.mxu0 0
    %254 = vmatpush1.bf16.msra.mxu0 %v234
    %255 = vmatprep.subr.bf16.mxu0 0
    %256 = vmatpush1.bf16.msra.mxu0 %v235
    %257 = vmatprep.subr.bf16.mxu0 0
    %258 = vmatpush1.bf16.msra.mxu0 %v236
    %259 = vmatprep.subr.bf16.mxu0 0
    %260 = vmatpush1.bf16.msra.mxu0 %v237
    %261 = vmatprep.subr.bf16.mxu0 0
    %262 = vmatpush1.bf16.msra.mxu0 %v238
    %263 = vmatprep.subr.bf16.mxu0 0
    %264 = vmatpush1.bf16.msra.mxu0 0
    %265 = vmatprep.subr.bf16.mxu0 0
    %266 = vmatpush1.bf16.msra.mxu0 0
    %267 = vmatprep.subr.bf16.mxu0 0
    %268 = vmatpush1.bf16.msra.mxu0 0
    %269 = vmatprep.subr.bf16.mxu0 0
    %270 = vmatpush1.bf16.msra.mxu0 0
    %271 = vmatprep.subr.bf16.mxu0 0
    %272 = vmatpush1.bf16.msra.mxu0 0
    %273 = vmatprep.subr.bf16.mxu0 0
    %274 = vmatpush1.bf16.msra.mxu0 0
    %275 = vmatprep.subr.bf16.mxu0 0
    %276 = vmatpush1.bf16.msra.mxu0 0
    %277 = vmatprep.subr.bf16.mxu0 0
    %278 = vmatpush1.bf16.msra.mxu0 0
    %279 = vmatprep.mubr.bf16.mxu0 0
    %280 = vmatmul.mubr.bf16.gmra.mrb[0].mxu0 %v183
    %v281 = vpop.f32.mrb[0].mxu0
    %v282 = vadd.f32 %v74, %v281
    %v283 = vpop.f32.mrb[0].mxu0
    %v284 = vpop.f32.mrb[0].mxu0
    %v285 = vadd.f32 %v79, %v284
    %v286 = vpop.f32.mrb[0].mxu0
    %287 = vmatprep.mubr.bf16.mxu0 0
    %288 = vmatmul.mubr.bf16.gmra.mrb[0].mxu0 %v184
    %v289 = vpop.f32.mrb[0].mxu0
    %v290 = vadd.f32 %v84, %v289
    %v291 = vpop.f32.mrb[0].mxu0
    %v292 = vpop.f32.mrb[0].mxu0
    %v293 = vadd.f32 %v89, %v292
    %v294 = vpop.f32.mrb[0].mxu0
    %295 = vmatprep.mubr.bf16.mxu0 0
    %296 = vmatmul.mubr.bf16.gmra.mrb[0].mxu0 %v185
    %v297 = vpop.f32.mrb[0].mxu0
    %v298 = vadd.f32 %v94, %v297
    %v299 = vpop.f32.mrb[0].mxu0
    %v300 = vpop.f32.mrb[0].mxu0
    %v301 = vadd.f32 %v99, %v300
    %v302 = vpop.f32.mrb[0].mxu0
    %303 = vmatprep.mubr.bf16.mxu0 0
    %304 = vmatmul.mubr.bf16.gmra.mrb[0].mxu0 %v186
    %v305 = vpop.f32.mrb[0].mxu0
    %v306 = vadd.f32 %v104, %v305
    %v307 = vpop.f32.mrb[0].mxu0
    %v308 = vpop.f32.mrb[0].mxu0
    %v309 = vadd.f32 %v109, %v308
    %v310 = vpop.f32.mrb[0].mxu0
    %311 = vmatprep.mubr.bf16.mxu0 0
    %312 = vmatmul.mubr.bf16.gmra.mrb[0].mxu0 %v187
    %v313 = vpop.f32.mrb[0].mxu0
    %v314 = vadd.f32 %v114, %v313
    %v315 = vpop.f32.mrb[0].mxu0
    %v316 = vpop.f32.mrb[0].mxu0
    %v317 = vadd.f32 %v119, %v316
    %v318 = vpop.f32.mrb[0].mxu0
    %319 = vmatprep.mubr.bf16.mxu0 0
    %320 = vmatmul.mubr.bf16.gmra.mrb[0].mxu0 %v188
    %v321 = vpop.f32.mrb[0].mxu0
    %v322 = vadd.f32 %v124, %v321
    %v323 = vpop.f32.mrb[0].mxu0
    %v324 = vpop.f32.mrb[0].mxu0
    %v325 = vadd.f32 %v129, %v324
    %v326 = vpop.f32.mrb[0].mxu0
    %327 = vmatprep.mubr.bf16.mxu0 0
    %328 = vmatmul.mubr.bf16.gmra.mrb[0].mxu0 %v189
    %v329 = vpop.f32.mrb[0].mxu0
    %v330 = vadd.f32 %v134, %v329
    %v331 = vpop.f32.mrb[0].mxu0
    %v332 = vpop.f32.mrb[0].mxu0
    %v333 = vadd.f32 %v139, %v332
    %v334 = vpop.f32.mrb[0].mxu0
    %335 = vmatprep.mubr.bf16.mxu0 0
    %336 = vmatmul.mubr.bf16.gmra.mrb[0].mxu0 %v190
    %v337 = vpop.f32.mrb[0].mxu0
    %v338 = vadd.f32 %v144, %v337
    %v339 = vpop.f32.mrb[0].mxu0
    %v340 = vpop.f32.mrb[0].mxu0
    %v341 = vadd.f32 %v149, %v340
    %v342 = vpop.f32.mrb[0].mxu0
    %343 = vdwg.mxu0
    %v344 = vmax.f32 %v282, 0.0
    %v345 = vmax.f32 %v285, 0.0
    %v346 = vmax.f32 %v290, 0.0
    %v347 = vmax.f32 %v293, 0.0
    %v348 = vmax.f32 %v298, 0.0
    %v349 = vmax.f32 %v301, 0.0
    %v350 = vmax.f32 %v306, 0.0
    %v351 = vmax.f32 %v309, 0.0
    %v352 = vmax.f32 %v314, 0.0
    %v353 = vmax.f32 %v317, 0.0
    %v354 = vmax.f32 %v322, 0.0
    %v355 = vmax.f32 %v325, 0.0
    %v356 = vmax.f32 %v330, 0.0
    %v357 = vmax.f32 %v333, 0.0
    %v358 = vmax.f32 %v338, 0.0
    %v359 = vmax.f32 %v341, 0.0
    %v360 = vld [vmem:[%s3] sm:$0xff]
    %v361 = vld [vmem:[%s3 + $0x8] sm:$0xff]
    %v362 = vld [vmem:[%s3 + $0x10] sm:$0xff]
    %v363 = vld [vmem:[%s3 + $0x18] sm:$0xff]
    %v364 = vld [vmem:[%s3 + $0x20] sm:$0xff]
    %v365 = vld [vmem:[%s3 + $0x28] sm:$0xff]
    %v366 = vld [vmem:[%s3 + $0x30] sm:$0xff]
    %v367 = vld [vmem:[%s3 + $0x38] sm:$0xff]
    %v368 = vld [vmem:[%s3 + $0x40] sm:$0xff]
    %v369 = vld [vmem:[%s3 + $0x48] sm:$0xff]
    %v370 = vld [vmem:[%s3 + $0x50] sm:$0xff]
    %v371 = vld [vmem:[%s3 + $0x58] sm:$0xff]
    %v372 = vld [vmem:[%s3 + $0x60] sm:$0xff]
    %v373 = vld [vmem:[%s3 + $0x68] sm:$0xff]
    %v374 = vld [vmem:[%s3 + $0x70] sm:$0xff]
    %v375 = vld [vmem:[%s3 + $0x78] sm:$0xff]
    %377 = vset.pattern.permute.xlu0 0
    %378 = vperm.xlu0 %377, %v360
    %v379 = vpop.permute.xlu0 %378
    %382 = vset.pattern.permute.xlu0 0
    %383 = vperm.xlu0 %382, %v361
    %v384 = vpop.permute.xlu0 %383
    %387 = vset.pattern.permute.xlu0 0
    %388 = vperm.xlu0 %387, %v362
    %v389 = vpop.permute.xlu0 %388
    %392 = vset.pattern.permute.xlu0 0
    %393 = vperm.xlu0 %392, %v363
    %v394 = vpop.permute.xlu0 %393
    %397 = vset.pattern.permute.xlu0 0
    %398 = vperm.xlu0 %397, %v364
    %v399 = vpop.permute.xlu0 %398
    %402 = vset.pattern.permute.xlu0 0
    %403 = vperm.xlu0 %402, %v365
    %v404 = vpop.permute.xlu0 %403
    %407 = vset.pattern.permute.xlu0 0
    %408 = vperm.xlu0 %407, %v366
    %v409 = vpop.permute.xlu0 %408
    %412 = vset.pattern.permute.xlu0 0
    %413 = vperm.xlu0 %412, %v367
    %v414 = vpop.permute.xlu0 %413
    %417 = vset.pattern.permute.xlu0 0
    %418 = vperm.xlu0 %417, %v368
    %v419 = vpop.permute.xlu0 %418
    %422 = vset.pattern.permute.xlu0 0
    %423 = vperm.xlu0 %422, %v369
    %v424 = vpop.permute.xlu0 %423
    %427 = vset.pattern.permute.xlu0 0
    %428 = vperm.xlu0 %427, %v370
    %v429 = vpop.permute.xlu0 %428
    %432 = vset.pattern.permute.xlu0 0
    %433 = vperm.xlu0 %432, %v371
    %v434 = vpop.permute.xlu0 %433
    %437 = vset.pattern.permute.xlu0 0
    %438 = vperm.xlu0 %437, %v372
    %v439 = vpop.permute.xlu0 %438
    %442 = vset.pattern.permute.xlu0 0
    %443 = vperm.xlu0 %442, %v373
    %v444 = vpop.permute.xlu0 %443
    %447 = vset.pattern.permute.xlu0 0
    %448 = vperm.xlu0 %447, %v374
    %v449 = vpop.permute.xlu0 %448
    %452 = vset.pattern.permute.xlu0 0
    %453 = vperm.xlu0 %452, %v375
    %v454 = vpop.permute.xlu0 %453
    %v456 = vmul.f32 %v344, %v379
    %v457 = vmul.f32 %v345, %v384
    %v458 = vmul.f32 %v346, %v389
    %v459 = vmul.f32 %v347, %v394
    %v460 = vmul.f32 %v348, %v399
    %v461 = vmul.f32 %v349, %v404
    %v462 = vmul.f32 %v350, %v409
    %v463 = vmul.f32 %v351, %v414
    %v464 = vmul.f32 %v352, %v419
    %v465 = vmul.f32 %v353, %v424
    %v466 = vmul.f32 %v354, %v429
    %v467 = vmul.f32 %v355, %v434
    %v468 = vmul.f32 %v356, %v439
    %v469 = vmul.f32 %v357, %v444
    %v470 = vmul.f32 %v358, %v449
    %v471 = vmul.f32 %v359, %v454
    %v472 = vadd.f32 %v456, %v457
    %v473 = vadd.f32 %v472, %v458
    %v474 = vadd.f32 %v473, %v459
    %v475 = vadd.f32 %v474, %v460
    %v476 = vadd.f32 %v475, %v461
    %v477 = vadd.f32 %v476, %v462
    %v478 = vadd.f32 %v477, %v463
    %v479 = vadd.f32 %v478, %v464
    %v480 = vadd.f32 %v479, %v465
    %v481 = vadd.f32 %v480, %v466
    %v482 = vadd.f32 %v481, %v467
    %v483 = vadd.f32 %v482, %v468
    %v484 = vadd.f32 %v483, %v469
    %v485 = vadd.f32 %v484, %v470
    %v486 = vadd.f32 %v485, %v471
    %v487 = vrot.slane %v486, 4
    %v488 = vadd.f32 %v486, %v487
    %v489 = vrot.slane %v488, 2
    %v490 = vadd.f32 %v488, %v489
    %v491 = vrot.slane %v490, 1
    %v492 = vadd.f32 %v490, %v491
    %s493 = sld [smem:[#allocation2]]
    %v494 = vstv %s493
    %v495 = vadd.f32 %v492, %v494
    %v496 = vmax.f32 %v495, 0.0
    %497 = vst [vmem:[#allocation3] sm:$0x1] %v496
    // Predicated region
    $region22: #{tpu_custom_call.1} parent=1 // pred_check
      _
    $region23: #{tpu_custom_call.1} parent=1 // pred_check_branch
      %499 = sbr.rel (0) target = $region25
    $region24: #{tpu_custom_call.1} parent=1 // pred_region
      %s501 = ssub.s32 16, 16
      %502 = vsyncadd [#allocation4], %s501
      %s504 = sshll.u32 [#allocation3], 4
      %s505 = int_to_ptr.vmem [resolvable:$true] %s504
      %507 = dma.vmem_to_hbm [thread:$0]  %s505, 16, %s5, [#allocation4]
    $region25: #{tpu_custom_call.1} parent=1 // pred_fallthru
      _
    // Predicated region
    $region26: #{tpu_custom_call.1} parent=1 // pred_check
      _
    $region27: #{tpu_custom_call.1} parent=1 // pred_check_branch
      %509 = sbr.rel (0) target = $region29
    $region28: #{tpu_custom_call.1} parent=1 // pred_region
      %510 = dma.done [#allocation4], 16
    $region29: #{tpu_custom_call.1} parent=1 // pred_fallthru
      _
    %511 = vsyncpa [#allocation4], 1

</llo_original>
